<compile_context>
chip_gen: v6e
topology: v6e:2x2x1
jax: 0.10.0
libtpu: 0.0.40
codegen_flags: <defaults>
</compile_context>

<pallas_src>
import jax
import jax.numpy as jnp
from jax.experimental import pallas as pl
from jax.experimental.pallas import tpu as pltpu

LANE = 128


def _round_up(x, m):
    return ((x + m - 1) // m) * m


def mlp_kernel(x_ref,
               w1_ref, b1_ref,
               w2_ref, b2_ref,
               w3_ref, b3_ref,
               w4_ref, b4_ref,
               w5_ref, b5_ref,
               o_ref):
    # TODO(synk): dropout (p=0.2/0.5/0.3) omitted -- eval-mode forward (identity).
    def layer(h, w_ref, b_ref, relu=True):
        y = jnp.dot(h, w_ref[...], preferred_element_type=jnp.float32) + b_ref[...]
        if relu:
            y = jnp.maximum(y, 0.0)
        return y

    h = x_ref[...]                                            # bf16 (TB, in)
    h = layer(h, w1_ref, b1_ref).astype(jnp.bfloat16)
    h = layer(h, w2_ref, b2_ref).astype(jnp.bfloat16)
    h = layer(h, w3_ref, b3_ref).astype(jnp.bfloat16)
    h = layer(h, w4_ref, b4_ref).astype(jnp.bfloat16)
    out = layer(h, w5_ref, b5_ref, relu=False)                # f32 (TB, 128)
    o_ref[...] = out.astype(o_ref.dtype)


def class2_mlp_forward(x, params, *, tb_max=256):
    """x: [B, input_size] float32.
    params: dict with w1..w5 stored as (in, out) and b1..b5 as (1, out), f32."""
    B, in_f = x.shape
    num_classes = params["w5"].shape[1]

    # ---- lane-dense padding of the narrow tails (exact: zero pads) ----------
    d4 = params["w4"].shape[1]             # 64
    d4_pad = _round_up(d4, LANE)           # 128
    c_pad = _round_up(num_classes, LANE)   # 128
    w4 = jnp.pad(params["w4"], ((0, 0), (0, d4_pad - d4)))
    b4 = jnp.pad(params["b4"], ((0, 0), (0, d4_pad - d4)))
    w5 = jnp.pad(params["w5"], ((0, d4_pad - d4), (0, c_pad - num_classes)))
    b5 = jnp.pad(params["b5"], ((0, 0), (0, c_pad - num_classes)))

    # ---- batch tiling --------------------------------------------------------
    TB = min(tb_max, _round_up(B, 8))      # multiple of 8, capped at tb_max
    B_pad = _round_up(B, TB)
    x_p = jnp.pad(x, ((0, B_pad - B), (0, 0))).astype(jnp.bfloat16)

    ws = [w.astype(jnp.bfloat16)
          for w in (params["w1"], params["w2"], params["w3"], w4, w5)]
    bs = [b.astype(jnp.float32)
          for b in (params["b1"], params["b2"], params["b3"], b4, b5)]

    def const_spec(arr):  # weights/biases: same block every step -> VMEM resident
        return pl.BlockSpec(arr.shape, lambda i: (0, 0))

    in_specs = [pl.BlockSpec((TB, in_f), lambda i: (i, 0))]
    args = [x_p]
    for w, b in zip(ws, bs):
        in_specs += [const_spec(w), const_spec(b)]
        args += [w, b]
    out_specs = pl.BlockSpec((TB, c_pad), lambda i: (i, 0))

    # advisory cost estimate for the XLA scheduler
    dims = [in_f, 128, 256, 128, d4_pad, c_pad]
    flops = 2 * B_pad * sum(dims[i] * dims[i + 1] for i in range(5))
    bytes_accessed = (x_p.size * 2
                      + sum(w.size * 2 for w in ws)
                      + sum(b.size * 4 for b in bs)
                      + B_pad * c_pad * 4)

    out_padded = pl.pallas_call(
        mlp_kernel,
        out_shape=jax.ShapeDtypeStruct((B_pad, c_pad), jnp.float32),
        grid=(B_pad // TB,),
        in_specs=in_specs,
        out_specs=out_specs,
        compiler_params=pltpu.CompilerParams(
            dimension_semantics=("parallel",)),
        cost_estimate=pl.CostEstimate(
            flops=flops, transcendentals=0, bytes_accessed=bytes_accessed),
    )(*args)

    return out_padded[:B, :num_classes]


def init_params(key, input_size, num_classes):
    """Deterministic synthetic params matching nn.Linear shapes.
    PyTorch Linear weight is (out, in); we store the transpose (in, out)."""
    dims = [input_size, 128, 256, 128, 64, num_classes]
    params = {}
    keys = jax.random.split(key, 2 * (len(dims) - 1))
    for i in range(len(dims) - 1):
        fan_in, fan_out = dims[i], dims[i + 1]
        bound = 1.0 / jnp.sqrt(fan_in)
        w = jax.random.uniform(keys[2 * i], (fan_in, fan_out),
                               minval=-bound, maxval=bound, dtype=jnp.float32)
        b = jax.random.uniform(keys[2 * i + 1], (1, fan_out),
                               minval=-bound, maxval=bound, dtype=jnp.float32)
        params[f"w{i + 1}"] = w
        params[f"b{i + 1}"] = b
    return params


if __name__ == "__main__":
    key = jax.random.PRNGKey(0)
    k_x, k_p = jax.random.split(key)

    batch = 8
    input_size = 32
    num_classes = 10

    x = jax.random.normal(k_x, (batch, input_size), dtype=jnp.float32)
    params = init_params(k_p, input_size, num_classes)

    out = class2_mlp_forward(x, params)
    out = jax.block_until_ready(out)

    # Pure-JAX f32 reference (kernel uses bf16 operands -> loose tolerance).
    def ref(x, p):
        h = x
        for i in range(1, 5):
            h = jnp.maximum(h @ p[f"w{i}"] + p[f"b{i}"], 0.0)
        return h @ p["w5"] + p["b5"]

    ref_out = ref(x, params)
    assert out.shape == (batch, num_classes)
    assert jnp.allclose(out, ref_out, atol=5e-2, rtol=5e-2), (
        float(jnp.max(jnp.abs(out - ref_out))))

    print("KERNEL_OK")
</pallas_src>

<mosaic_0001>
module attributes {stable_mosaic.version = 11 : i64} {
  func.func @mlp_kernel(%arg0: i32, %arg1: memref<8x32xbf16, #tpu.memory_space<vmem>>, %arg2: memref<32x128xbf16, #tpu.memory_space<vmem>>, %arg3: memref<1x128xf32, #tpu.memory_space<vmem>>, %arg4: memref<128x256xbf16, #tpu.memory_space<vmem>>, %arg5: memref<1x256xf32, #tpu.memory_space<vmem>>, %arg6: memref<256x128xbf16, #tpu.memory_space<vmem>>, %arg7: memref<1x128xf32, #tpu.memory_space<vmem>>, %arg8: memref<128x128xbf16, #tpu.memory_space<vmem>>, %arg9: memref<1x128xf32, #tpu.memory_space<vmem>>, %arg10: memref<128x128xbf16, #tpu.memory_space<vmem>>, %arg11: memref<1x128xf32, #tpu.memory_space<vmem>>, %arg12: memref<8x128xf32, #tpu.memory_space<vmem>>) attributes {dimension_semantics = [#tpu.dimension_semantics<parallel>], iteration_bounds = array<i64: 1>, scalar_prefetch = 0 : i64, scratch_operands = 0 : i64, tpu.core_type = #tpu.core_type<tc>, window_params = [{transform_indices = @transform_0, window_bounds = array<i64: 8, 32>}, {pipeline_mode = #tpu.pipeline_mode<synchronous>, transform_indices = @transform_1, window_bounds = array<i64: 32, 128>}, {pipeline_mode = #tpu.pipeline_mode<synchronous>, transform_indices = @transform_2, window_bounds = array<i64: 1, 128>}, {pipeline_mode = #tpu.pipeline_mode<synchronous>, transform_indices = @transform_3, window_bounds = array<i64: 128, 256>}, {pipeline_mode = #tpu.pipeline_mode<synchronous>, transform_indices = @transform_4, window_bounds = array<i64: 1, 256>}, {pipeline_mode = #tpu.pipeline_mode<synchronous>, transform_indices = @transform_5, window_bounds = array<i64: 256, 128>}, {pipeline_mode = #tpu.pipeline_mode<synchronous>, transform_indices = @transform_6, window_bounds = array<i64: 1, 128>}, {pipeline_mode = #tpu.pipeline_mode<synchronous>, transform_indices = @transform_7, window_bounds = array<i64: 128, 128>}, {pipeline_mode = #tpu.pipeline_mode<synchronous>, transform_indices = @transform_8, window_bounds = array<i64: 1, 128>}, {pipeline_mode = #tpu.pipeline_mode<synchronous>, transform_indices = @transform_9, window_bounds = array<i64: 128, 128>}, {pipeline_mode = #tpu.pipeline_mode<synchronous>, transform_indices = @transform_10, window_bounds = array<i64: 1, 128>}, {transform_indices = @transform_11, window_bounds = array<i64: 8, 128>}]} {
    %c0 = arith.constant 0 : index
    %c0_0 = arith.constant 0 : index
    %0 = vector.load %arg1[%c0, %c0_0] : memref<8x32xbf16, #tpu.memory_space<vmem>>, vector<8x32xbf16>
    %c0_1 = arith.constant 0 : index
    %c0_2 = arith.constant 0 : index
    %1 = vector.load %arg2[%c0_1, %c0_2] : memref<32x128xbf16, #tpu.memory_space<vmem>>, vector<32x128xbf16>
    %cst = arith.constant dense<0.000000e+00> : vector<8x128xf32>
    %2 = tpu.matmul %0, %1, %cst {dimension_numbers = #tpu.dot_dimension_numbers<[1], [0], [0], [1], [0, 0, 1, 1], [], []>} : vector<8x32xbf16>, vector<32x128xbf16>, vector<8x128xf32> -> vector<8x128xf32>
    %c0_3 = arith.constant 0 : index
    %c0_4 = arith.constant 0 : index
    %3 = vector.load %arg3[%c0_3, %c0_4] : memref<1x128xf32, #tpu.memory_space<vmem>>, vector<1x128xf32>
    %4 = vector.broadcast %3 : vector<1x128xf32> to vector<8x128xf32>
    %5 = arith.addf %2, %4 : vector<8x128xf32>
    %cst_5 = arith.constant 0.000000e+00 : f32
    %6 = vector.broadcast %cst_5 : f32 to vector<8x128xf32>
    %7 = arith.maximumf %5, %6 : vector<8x128xf32>
    %8 = arith.truncf %7 : vector<8x128xf32> to vector<8x128xbf16>
    %c0_6 = arith.constant 0 : index
    %c0_7 = arith.constant 0 : index
    %9 = vector.load %arg4[%c0_6, %c0_7] : memref<128x256xbf16, #tpu.memory_space<vmem>>, vector<128x256xbf16>
    %cst_8 = arith.constant dense<0.000000e+00> : vector<8x256xf32>
    %10 = tpu.matmul %8, %9, %cst_8 {dimension_numbers = #tpu.dot_dimension_numbers<[1], [0], [0], [1], [0, 0, 1, 1], [], []>} : vector<8x128xbf16>, vector<128x256xbf16>, vector<8x256xf32> -> vector<8x256xf32>
    %c0_9 = arith.constant 0 : index
    %c0_10 = arith.constant 0 : index
    %11 = vector.load %arg5[%c0_9, %c0_10] : memref<1x256xf32, #tpu.memory_space<vmem>>, vector<1x256xf32>
    %12 = vector.broadcast %11 : vector<1x256xf32> to vector<8x256xf32>
    %13 = arith.addf %10, %12 : vector<8x256xf32>
    %cst_11 = arith.constant 0.000000e+00 : f32
    %14 = vector.broadcast %cst_11 : f32 to vector<8x256xf32>
    %15 = arith.maximumf %13, %14 : vector<8x256xf32>
    %16 = arith.truncf %15 : vector<8x256xf32> to vector<8x256xbf16>
    %c0_12 = arith.constant 0 : index
    %c0_13 = arith.constant 0 : index
    %17 = vector.load %arg6[%c0_12, %c0_13] : memref<256x128xbf16, #tpu.memory_space<vmem>>, vector<256x128xbf16>
    %cst_14 = arith.constant dense<0.000000e+00> : vector<8x128xf32>
    %18 = tpu.matmul %16, %17, %cst_14 {dimension_numbers = #tpu.dot_dimension_numbers<[1], [0], [0], [1], [0, 0, 1, 1], [], []>} : vector<8x256xbf16>, vector<256x128xbf16>, vector<8x128xf32> -> vector<8x128xf32>
    %c0_15 = arith.constant 0 : index
    %c0_16 = arith.constant 0 : index
    %19 = vector.load %arg7[%c0_15, %c0_16] : memref<1x128xf32, #tpu.memory_space<vmem>>, vector<1x128xf32>
    %20 = vector.broadcast %19 : vector<1x128xf32> to vector<8x128xf32>
    %21 = arith.addf %18, %20 : vector<8x128xf32>
    %cst_17 = arith.constant 0.000000e+00 : f32
    %22 = vector.broadcast %cst_17 : f32 to vector<8x128xf32>
    %23 = arith.maximumf %21, %22 : vector<8x128xf32>
    %24 = arith.truncf %23 : vector<8x128xf32> to vector<8x128xbf16>
    %c0_18 = arith.constant 0 : index
    %c0_19 = arith.constant 0 : index
    %25 = vector.load %arg8[%c0_18, %c0_19] : memref<128x128xbf16, #tpu.memory_space<vmem>>, vector<128x128xbf16>
    %cst_20 = arith.constant dense<0.000000e+00> : vector<8x128xf32>
    %26 = tpu.matmul %24, %25, %cst_20 {dimension_numbers = #tpu.dot_dimension_numbers<[1], [0], [0], [1], [0, 0, 1, 1], [], []>} : vector<8x128xbf16>, vector<128x128xbf16>, vector<8x128xf32> -> vector<8x128xf32>
    %c0_21 = arith.constant 0 : index
    %c0_22 = arith.constant 0 : index
    %27 = vector.load %arg9[%c0_21, %c0_22] : memref<1x128xf32, #tpu.memory_space<vmem>>, vector<1x128xf32>
    %28 = vector.broadcast %27 : vector<1x128xf32> to vector<8x128xf32>
    %29 = arith.addf %26, %28 : vector<8x128xf32>
    %cst_23 = arith.constant 0.000000e+00 : f32
    %30 = vector.broadcast %cst_23 : f32 to vector<8x128xf32>
    %31 = arith.maximumf %29, %30 : vector<8x128xf32>
    %32 = arith.truncf %31 : vector<8x128xf32> to vector<8x128xbf16>
    %c0_24 = arith.constant 0 : index
    %c0_25 = arith.constant 0 : index
    %33 = vector.load %arg10[%c0_24, %c0_25] : memref<128x128xbf16, #tpu.memory_space<vmem>>, vector<128x128xbf16>
    %cst_26 = arith.constant dense<0.000000e+00> : vector<8x128xf32>
    %34 = tpu.matmul %32, %33, %cst_26 {dimension_numbers = #tpu.dot_dimension_numbers<[1], [0], [0], [1], [0, 0, 1, 1], [], []>} : vector<8x128xbf16>, vector<128x128xbf16>, vector<8x128xf32> -> vector<8x128xf32>
    %c0_27 = arith.constant 0 : index
    %c0_28 = arith.constant 0 : index
    %35 = vector.load %arg11[%c0_27, %c0_28] : memref<1x128xf32, #tpu.memory_space<vmem>>, vector<1x128xf32>
    %36 = vector.broadcast %35 : vector<1x128xf32> to vector<8x128xf32>
    %37 = arith.addf %34, %36 : vector<8x128xf32>
    %c0_29 = arith.constant 0 : index
    %c0_30 = arith.constant 0 : index
    %38 = vector.load %arg12[%c0_29, %c0_30] : memref<8x128xf32, #tpu.memory_space<vmem>>, vector<8x128xf32>
    tpu.vector_store %arg12[%c0_29, %c0_30], %37 {strides = array<i32>} : memref<8x128xf32, #tpu.memory_space<vmem>>, vector<8x128xf32>,
    return
  }
  func.func @transform_0(%arg0: i32) -> (i32, i32) {
    %c0_i32 = arith.constant 0 : i32
    %c0_i32_0 = arith.constant 0 : i32
    return %arg0, %c0_i32 : i32, i32
  }
  func.func @transform_1(%arg0: i32) -> (i32, i32) {
    %c0_i32 = arith.constant 0 : i32
    %c0_i32_0 = arith.constant 0 : i32
    %c0_i32_1 = arith.constant 0 : i32
    return %c0_i32, %c0_i32_0 : i32, i32
  }
  func.func @transform_2(%arg0: i32) -> (i32, i32) {
    %c0_i32 = arith.constant 0 : i32
    %c0_i32_0 = arith.constant 0 : i32
    %c0_i32_1 = arith.constant 0 : i32
    return %c0_i32, %c0_i32_0 : i32, i32
  }
  func.func @transform_3(%arg0: i32) -> (i32, i32) {
    %c0_i32 = arith.constant 0 : i32
    %c0_i32_0 = arith.constant 0 : i32
    %c0_i32_1 = arith.constant 0 : i32
    return %c0_i32, %c0_i32_0 : i32, i32
  }
  func.func @transform_4(%arg0: i32) -> (i32, i32) {
    %c0_i32 = arith.constant 0 : i32
    %c0_i32_0 = arith.constant 0 : i32
    %c0_i32_1 = arith.constant 0 : i32
    return %c0_i32, %c0_i32_0 : i32, i32
  }
  func.func @transform_5(%arg0: i32) -> (i32, i32) {
    %c0_i32 = arith.constant 0 : i32
    %c0_i32_0 = arith.constant 0 : i32
    %c0_i32_1 = arith.constant 0 : i32
    return %c0_i32, %c0_i32_0 : i32, i32
  }
  func.func @transform_6(%arg0: i32) -> (i32, i32) {
    %c0_i32 = arith.constant 0 : i32
    %c0_i32_0 = arith.constant 0 : i32
    %c0_i32_1 = arith.constant 0 : i32
    return %c0_i32, %c0_i32_0 : i32, i32
  }
  func.func @transform_7(%arg0: i32) -> (i32, i32) {
    %c0_i32 = arith.constant 0 : i32
    %c0_i32_0 = arith.constant 0 : i32
    %c0_i32_1 = arith.constant 0 : i32
    return %c0_i32, %c0_i32_0 : i32, i32
  }
  func.func @transform_8(%arg0: i32) -> (i32, i32) {
    %c0_i32 = arith.constant 0 : i32
    %c0_i32_0 = arith.constant 0 : i32
    %c0_i32_1 = arith.constant 0 : i32
    return %c0_i32, %c0_i32_0 : i32, i32
  }
  func.func @transform_9(%arg0: i32) -> (i32, i32) {
    %c0_i32 = arith.constant 0 : i32
    %c0_i32_0 = arith.constant 0 : i32
    %c0_i32_1 = arith.constant 0 : i32
    return %c0_i32, %c0_i32_0 : i32, i32
  }
  func.func @transform_10(%arg0: i32) -> (i32, i32) {
    %c0_i32 = arith.constant 0 : i32
    %c0_i32_0 = arith.constant 0 : i32
    %c0_i32_1 = arith.constant 0 : i32
    return %c0_i32, %c0_i32_0 : i32, i32
  }
  func.func @transform_11(%arg0: i32) -> (i32, i32) {
    %c0_i32 = arith.constant 0 : i32
    %c0_i32_0 = arith.constant 0 : i32
    return %arg0, %c0_i32 : i32, i32
  }
}

</mosaic_0001>

<llo_original>
// kernel: tpu_custom_call.1
$region0: #{tpu_custom_call.1}
  #allocation0 [shape = 'u32[]', space=smem, size = 0x4, offset = 0x4, fixed_abs, tag = 'smem constant byte address 0x4 - core index']
  #allocation1 [shape = 'u32[144,128]{1,0:T(1,128)}', space=vmem, size = 0x12000, scoped, tag = 'internal scratch']
  %s0 = inlined_call_operand.hbm [shape: bf16[8,32], index: 0, kind: input, shape index: {}]
  %s1 = inlined_call_operand.hbm [shape: bf16[32,128], index: 1, kind: input, shape index: {}]
  %s2 = inlined_call_operand.vmem [shape: f32[1,128], index: 2, kind: input, shape index: {}]
  %s3 = inlined_call_operand.hbm [shape: bf16[128,256], index: 3, kind: input, shape index: {}]
  %s4 = inlined_call_operand.vmem [shape: f32[1,256], index: 4, kind: input, shape index: {}]
  %s5 = inlined_call_operand.hbm [shape: bf16[256,128], index: 5, kind: input, shape index: {}]
  %s6 = inlined_call_operand.vmem [shape: f32[1,128], index: 6, kind: input, shape index: {}]
  %s7 = inlined_call_operand.hbm [shape: bf16[128,128], index: 7, kind: input, shape index: {}]
  %s8 = inlined_call_operand.vmem [shape: f32[1,128], index: 8, kind: input, shape index: {}]
  %s9 = inlined_call_operand.hbm [shape: bf16[128,128], index: 9, kind: input, shape index: {}]
  %s10 = inlined_call_operand.vmem [shape: f32[1,128], index: 10, kind: input, shape index: {}]
  %s11 = inlined_call_operand.hbm [shape: f32[8,128], index: 11, kind: output, shape index: {}]
  %s12 = sld [smem:[#allocation0]]
  $region78: #{tpu_custom_call.1} parent=0
    _
  %s14 = ssub.s32 1, %s12
  %s15 = scalar_select 0, %s14, %s12
  $region1: #{tpu_custom_call.1} parent=0
    #allocation2 [shape = 'u8[2048]{0}', space=vmem, size = 0x800, scoped, tag = 'input window, operand 0, single buffered']
    #allocation3 [shape = 's32[1]{0}', space=sflag, size = 0x4, scoped, tag = 'scoped memory for tpu_custom_call.1']
    #allocation4 [shape = 's32[1]{0}', space=sflag, size = 0x4, scoped, tag = 'scoped memory for tpu_custom_call.1']
    #allocation5 [shape = 'u8[8192]{0}', space=vmem, size = 0x2000, scoped, tag = 'input window, operand 1, single buffered']
    #allocation6 [shape = 's32[1]{0}', space=sflag, size = 0x4, scoped, tag = 'scoped memory for tpu_custom_call.1']
    #allocation7 [shape = 'u8[65536]{0}', space=vmem, size = 0x10000, scoped, tag = 'input window, operand 3, single buffered']
    #allocation8 [shape = 'u8[65536]{0}', space=vmem, size = 0x10000, scoped, tag = 'input window, operand 5, single buffered']
    #allocation9 [shape = 's32[1]{0}', space=sflag, size = 0x4, scoped, tag = 'scoped memory for tpu_custom_call.1']
    #allocation10 [shape = 'u8[32768]{0}', space=vmem, size = 0x8000, scoped, tag = 'input window, operand 7, single buffered']
    #allocation11 [shape = 'u8[32768]{0}', space=vmem, size = 0x8000, scoped, tag = 'input window, operand 9, single buffered']
    #allocation12 [shape = 's32[1]{0}', space=sflag, size = 0x4, scoped, tag = 'scoped memory for tpu_custom_call.1']
    #allocation13 [shape = 'u8[4096]{0}', space=vmem, size = 0x1000, scoped, tag = 'output window, operand 0, single buffered']
    %16 = vsyncpa [#allocation3], 0
    %17 = vsyncpa [#allocation6], 0
    %18 = vsyncpa [#allocation9], 0
    %19 = vsyncpa [#allocation12], 0
    %20 = vsyncpa [#allocation4], 0
    // Predicated region
    $region2: #{tpu_custom_call.1} parent=1 // pred_check
      _
    $region3: #{tpu_custom_call.1} parent=1 // pred_check_branch
      %22 = sbr.rel (0) target = $region5
    $region4: #{tpu_custom_call.1} parent=1 // pred_region
      %s24 = ssub.s32 64, 64
      %25 = vsyncadd [#allocation3], %s24
      %s27 = sshll.u32 [#allocation2], 4
      %s28 = int_to_ptr.vmem [resolvable:$true] %s27
      %30 = dma.hbm_to_vmem [thread:$0]  %s0, 64, %s28, [#allocation3]
    $region5: #{tpu_custom_call.1} parent=1 // pred_fallthru
      _
    // Predicated region
    $region6: #{tpu_custom_call.1} parent=1 // pred_check
      _
    $region7: #{tpu_custom_call.1} parent=1 // pred_check_branch
      %32 = sbr.rel (0) target = $region9
    $region8: #{tpu_custom_call.1} parent=1 // pred_region
      %s34 = ssub.s32 256, 256
      %35 = vsyncadd [#allocation6], %s34
      %s36 = sshll.u32 [#allocation5], 4
      %s37 = int_to_ptr.vmem [resolvable:$true] %s36
      %42 = dma.hbm_to_vmem [thread:$0]  %s1, 256, %s37, [#allocation6], 64, 64, 4
    $region9: #{tpu_custom_call.1} parent=1 // pred_fallthru
      _
    // Predicated region
    $region10: #{tpu_custom_call.1} parent=1 // pred_check
      _
    $region11: #{tpu_custom_call.1} parent=1 // pred_check_branch
      %44 = sbr.rel (0) target = $region13
    $region12: #{tpu_custom_call.1} parent=1 // pred_region
      _
    $region13: #{tpu_custom_call.1} parent=1 // pred_fallthru
      _
    // Predicated region
    $region14: #{tpu_custom_call.1} parent=1 // pred_check
      _
    $region15: #{tpu_custom_call.1} parent=1 // pred_check_branch
      %46 = sbr.rel (0) target = $region17
    $region16: #{tpu_custom_call.1} parent=1 // pred_region
      %s48 = ssub.s32 2048, 2048
      %49 = vsyncadd [#allocation6], %s48
      %s50 = sshll.u32 [#allocation7], 4
      %s51 = int_to_ptr.vmem [resolvable:$true] %s50
      %56 = dma.hbm_to_vmem [thread:$0]  %s3, 2048, %s51, [#allocation6], 128, 128, 8
    $region17: #{tpu_custom_call.1} parent=1 // pred_fallthru
      _
    // Predicated region
    $region18: #{tpu_custom_call.1} parent=1 // pred_check
      _
    $region19: #{tpu_custom_call.1} parent=1 // pred_check_branch
      %58 = sbr.rel (0) target = $region21
    $region20: #{tpu_custom_call.1} parent=1 // pred_region
      _
    $region21: #{tpu_custom_call.1} parent=1 // pred_fallthru
      _
    // Predicated region
    $region22: #{tpu_custom_call.1} parent=1 // pred_check
      _
    $region23: #{tpu_custom_call.1} parent=1 // pred_check_branch
      %60 = sbr.rel (0) target = $region25
    $region24: #{tpu_custom_call.1} parent=1 // pred_region
      %s62 = ssub.s32 2048, 2048
      %63 = vsyncadd [#allocation9], %s62
      %s64 = sshll.u32 [#allocation8], 4
      %s65 = int_to_ptr.vmem [resolvable:$true] %s64
      %70 = dma.hbm_to_vmem [thread:$0]  %s5, 2048, %s65, [#allocation9], 64, 64, 4
    $region25: #{tpu_custom_call.1} parent=1 // pred_fallthru
      _
    // Predicated region
    $region26: #{tpu_custom_call.1} parent=1 // pred_check
      _
    $region27: #{tpu_custom_call.1} parent=1 // pred_check_branch
      %72 = sbr.rel (0) target = $region29
    $region28: #{tpu_custom_call.1} parent=1 // pred_region
      _
    $region29: #{tpu_custom_call.1} parent=1 // pred_fallthru
      _
    // Predicated region
    $region30: #{tpu_custom_call.1} parent=1 // pred_check
      _
    $region31: #{tpu_custom_call.1} parent=1 // pred_check_branch
      %74 = sbr.rel (0) target = $region33
    $region32: #{tpu_custom_call.1} parent=1 // pred_region
      %s76 = ssub.s32 1024, 1024
      %77 = vsyncadd [#allocation9], %s76
      %s78 = sshll.u32 [#allocation10], 4
      %s79 = int_to_ptr.vmem [resolvable:$true] %s78
      %84 = dma.hbm_to_vmem [thread:$0]  %s7, 1024, %s79, [#allocation9], 64, 64, 4
    $region33: #{tpu_custom_call.1} parent=1 // pred_fallthru
      _
    // Predicated region
    $region34: #{tpu_custom_call.1} parent=1 // pred_check
      _
    $region35: #{tpu_custom_call.1} parent=1 // pred_check_branch
      %86 = sbr.rel (0) target = $region37
    $region36: #{tpu_custom_call.1} parent=1 // pred_region
      _
    $region37: #{tpu_custom_call.1} parent=1 // pred_fallthru
      _
    // Predicated region
    $region38: #{tpu_custom_call.1} parent=1 // pred_check
      _
    $region39: #{tpu_custom_call.1} parent=1 // pred_check_branch
      %88 = sbr.rel (0) target = $region41
    $region40: #{tpu_custom_call.1} parent=1 // pred_region
      %s90 = ssub.s32 1024, 1024
      %91 = vsyncadd [#allocation12], %s90
      %s92 = sshll.u32 [#allocation11], 4
      %s93 = int_to_ptr.vmem [resolvable:$true] %s92
      %98 = dma.hbm_to_vmem [thread:$0]  %s9, 1024, %s93, [#allocation12], 64, 64, 4
    $region41: #{tpu_custom_call.1} parent=1 // pred_fallthru
      _
    // Predicated region
    $region42: #{tpu_custom_call.1} parent=1 // pred_check
      _
    $region43: #{tpu_custom_call.1} parent=1 // pred_check_branch
      %100 = sbr.rel (0) target = $region45
    $region44: #{tpu_custom_call.1} parent=1 // pred_region
      _
    $region45: #{tpu_custom_call.1} parent=1 // pred_fallthru
      _
    // Predicated region
    $region46: #{tpu_custom_call.1} parent=1 // pred_check
      _
    $region47: #{tpu_custom_call.1} parent=1 // pred_check_branch
      %102 = sbr.rel (0) target = $region49
    $region48: #{tpu_custom_call.1} parent=1 // pred_region
      %103 = dma.done [#allocation3], 64
    $region49: #{tpu_custom_call.1} parent=1 // pred_fallthru
      _
    // Predicated region
    $region50: #{tpu_custom_call.1} parent=1 // pred_check
      _
    $region51: #{tpu_custom_call.1} parent=1 // pred_check_branch
      %105 = sbr.rel (0) target = $region53
    $region52: #{tpu_custom_call.1} parent=1 // pred_region
      %106 = dma.done [#allocation6], 256
    $region53: #{tpu_custom_call.1} parent=1 // pred_fallthru
      _
    // Predicated region
    $region54: #{tpu_custom_call.1} parent=1 // pred_check
      _
    $region55: #{tpu_custom_call.1} parent=1 // pred_check_branch
      %108 = sbr.rel (0) target = $region57
    $region56: #{tpu_custom_call.1} parent=1 // pred_region
      %109 = dma.done [#allocation6], 2048
    $region57: #{tpu_custom_call.1} parent=1 // pred_fallthru
      _
    // Predicated region
    $region58: #{tpu_custom_call.1} parent=1 // pred_check
      _
    $region59: #{tpu_custom_call.1} parent=1 // pred_check_branch
      %111 = sbr.rel (0) target = $region61
    $region60: #{tpu_custom_call.1} parent=1 // pred_region
      %112 = dma.done [#allocation9], 2048
    $region61: #{tpu_custom_call.1} parent=1 // pred_fallthru
      _
    // Predicated region
    $region62: #{tpu_custom_call.1} parent=1 // pred_check
      _
    $region63: #{tpu_custom_call.1} parent=1 // pred_check_branch
      %114 = sbr.rel (0) target = $region65
    $region64: #{tpu_custom_call.1} parent=1 // pred_region
      %115 = dma.done [#allocation9], 1024
    $region65: #{tpu_custom_call.1} parent=1 // pred_fallthru
      _
    // Predicated region
    $region66: #{tpu_custom_call.1} parent=1 // pred_check
      _
    $region67: #{tpu_custom_call.1} parent=1 // pred_check_branch
      %117 = sbr.rel (0) target = $region69
    $region68: #{tpu_custom_call.1} parent=1 // pred_region
      %118 = dma.done [#allocation12], 1024
    $region69: #{tpu_custom_call.1} parent=1 // pred_fallthru
      _
    %v120 = vld [vmem:[#allocation2] sm:$0xf]
    %v121 = vld [vmem:[#allocation5] sm:$0xf]
    %v122 = vld [vmem:[#allocation5 + $0x4] sm:$0xf]
    %v123 = vld [vmem:[#allocation5 + $0x8] sm:$0xf]
    %v124 = vld [vmem:[#allocation5 + $0xc] sm:$0xf]
    %v125 = vld [vmem:[%s2] sm:$0x1]
    %v127 = vlaneseq
    %v128 = vshrl.u32 %v127, 7
    %v129 = vsub.s32 0, %v128
    %v130 = vrot.slane %v125, %v129
    %v136 = vunpack.c.l.b16 %v121
    %v137 = vunpack.c.l.b16 %v122
    %v138 = vunpack.c.l.b16 %v123
    %v139 = vunpack.c.l.b16 %v124
    %v140 = vpack.c.b16 %v137, %v136
    %v141 = vpack.c.b16 %v139, %v138
    %vm144 = vcmask 261120
    %v146 = vsel %vm144, %v120, 0
    %148 = vmatprep.subr.bf16.mxu0 0
    %149 = vmatpush1.bf16.msra.mxu0 0
    %150 = vmatprep.subr.bf16.mxu0 0
    %151 = vmatpush1.bf16.msra.mxu0 0
    %152 = vmatprep.subr.bf16.mxu0 0
    %153 = vmatpush1.bf16.msra.mxu0 0
    %154 = vmatprep.subr.bf16.mxu0 0
    %155 = vmatpush1.bf16.msra.mxu0 0
    %156 = vmatprep.subr.bf16.mxu0 0
    %157 = vmatpush1.bf16.msra.mxu0 0
    %158 = vmatprep.subr.bf16.mxu0 0
    %159 = vmatpush1.bf16.msra.mxu0 0
    %160 = vmatprep.subr.bf16.mxu0 0
    %161 = vmatpush1.bf16.msra.mxu0 %v141
    %162 = vmatprep.subr.bf16.mxu0 0
    %163 = vmatpush1.bf16.msra.mxu0 %v140
    %164 = vmatprep.subr.bf16.mxu0 0
    %165 = vmatpush2.bf16.msra.mxu0 0
    %166 = vmatprep.subr.bf16.mxu0 0
    %167 = vmatpush2.bf16.msra.mxu0 0
    %168 = vmatprep.subr.bf16.mxu0 0
    %169 = vmatpush2.bf16.msra.mxu0 0
    %170 = vmatprep.subr.bf16.mxu0 0
    %171 = vmatpush2.bf16.msra.mxu0 0
    %172 = vmatprep.subr.bf16.mxu0 0
    %173 = vmatpush2.bf16.msra.mxu0 0
    %174 = vmatprep.subr.bf16.mxu0 0
    %175 = vmatpush2.bf16.msra.mxu0 0
    %176 = vmatprep.subr.bf16.mxu0 0
    %177 = vmatpush2.bf16.msra.mxu0 0
    %178 = vmatprep.subr.bf16.mxu0 0
    %179 = vmatpush2.bf16.msra.mxu0 0
    %180 = vmatprep.mubr.bf16.mxu0 0
    %181 = vmatmul.mubr.bf16.gmra.mxu0 %v146
    %v182 = vpop.f32.mrf.mxu0
    %v183 = vadd.f32 %v130, %v182
    %v184 = vpop.f32.mrf.mxu0
    %v185 = vpop.f32.mrf.mxu0
    %v186 = vpop.f32.mrf.mxu0
    %187 = vdwg.mxu0
    %v188 = vmax.f32 %v183, 0.0
    %v189 = vpack.c.bf16 %v188, %v188
    %v190 = vld [vmem:[#allocation7] sm:$0xff]
    %v191 = vld [vmem:[#allocation7 + $0x8] sm:$0xff]
    %v192 = vld [vmem:[#allocation7 + $0x10] sm:$0xff]
    %v193 = vld [vmem:[#allocation7 + $0x18] sm:$0xff]
    %v194 = vld [vmem:[#allocation7 + $0x20] sm:$0xff]
    %v195 = vld [vmem:[#allocation7 + $0x28] sm:$0xff]
    %v196 = vld [vmem:[#allocation7 + $0x30] sm:$0xff]
    %v197 = vld [vmem:[#allocation7 + $0x38] sm:$0xff]
    %v198 = vld [vmem:[#allocation7 + $0x40] sm:$0xff]
    %v199 = vld [vmem:[#allocation7 + $0x48] sm:$0xff]
    %v200 = vld [vmem:[#allocation7 + $0x50] sm:$0xff]
    %v201 = vld [vmem:[#allocation7 + $0x58] sm:$0xff]
    %v202 = vld [vmem:[#allocation7 + $0x60] sm:$0xff]
    %v203 = vld [vmem:[#allocation7 + $0x68] sm:$0xff]
    %v204 = vld [vmem:[#allocation7 + $0x70] sm:$0xff]
    %v205 = vld [vmem:[#allocation7 + $0x78] sm:$0xff]
    %v206 = vld [vmem:[%s4] sm:$0x3]
    %v208 = vlaneseq
    %v209 = vshrl.u32 %v208, 7
    %v210 = vsub.s32 0, %v209
    %v211 = vrot.slane %v206, %v210
    %v212 = vlaneseq
    %v213 = vshrl.u32 %v212, 7
    %v214 = vsub.s32 1, %v213
    %v215 = vrot.slane %v206, %v214
    %v234 = vunpack.c.l.b16 %v190
    %v235 = vunpack.c.h.b16 %v190
    %v236 = vunpack.c.l.b16 %v191
    %v237 = vunpack.c.h.b16 %v191
    %v238 = vunpack.c.l.b16 %v192
    %v239 = vunpack.c.h.b16 %v192
    %v240 = vunpack.c.l.b16 %v193
    %v241 = vunpack.c.h.b16 %v193
    %v242 = vunpack.c.l.b16 %v194
    %v243 = vunpack.c.h.b16 %v194
    %v244 = vunpack.c.l.b16 %v195
    %v245 = vunpack.c.h.b16 %v195
    %v246 = vunpack.c.l.b16 %v196
    %v247 = vunpack.c.h.b16 %v196
    %v248 = vunpack.c.l.b16 %v197
    %v249 = vunpack.c.h.b16 %v197
    %v250 = vunpack.c.l.b16 %v198
    %v251 = vunpack.c.h.b16 %v198
    %v252 = vunpack.c.l.b16 %v199
    %v253 = vunpack.c.h.b16 %v199
    %v254 = vunpack.c.l.b16 %v200
    %v255 = vunpack.c.h.b16 %v200
    %v256 = vunpack.c.l.b16 %v201
    %v257 = vunpack.c.h.b16 %v201
    %v258 = vunpack.c.l.b16 %v202
    %v259 = vunpack.c.h.b16 %v202
    %v260 = vunpack.c.l.b16 %v203
    %v261 = vunpack.c.h.b16 %v203
    %v262 = vunpack.c.l.b16 %v204
    %v263 = vunpack.c.h.b16 %v204
    %v264 = vunpack.c.l.b16 %v205
    %v265 = vunpack.c.h.b16 %v205
    %v266 = vpack.c.b16 %v236, %v234
    %v267 = vpack.c.b16 %v237, %v235
    %v268 = vpack.c.b16 %v240, %v238
    %v269 = vpack.c.b16 %v241, %v239
    %v270 = vpack.c.b16 %v244, %v242
    %v271 = vpack.c.b16 %v245, %v243
    %v272 = vpack.c.b16 %v248, %v246
    %v273 = vpack.c.b16 %v249, %v247
    %v274 = vpack.c.b16 %v252, %v250
    %v275 = vpack.c.b16 %v253, %v251
    %v276 = vpack.c.b16 %v256, %v254
    %v277 = vpack.c.b16 %v257, %v255
    %v278 = vpack.c.b16 %v260, %v258
    %v279 = vpack.c.b16 %v261, %v259
    %v280 = vpack.c.b16 %v264, %v262
    %v281 = vpack.c.b16 %v265, %v263
    %298 = vmatprep.subr.bf16.mxu0 %v281
    %299 = vmatpush1.bf16.msra.mxu0 %v280
    %300 = vmatprep.subr.bf16.mxu0 %v279
    %301 = vmatpush1.bf16.msra.mxu0 %v278
    %302 = vmatprep.subr.bf16.mxu0 %v277
    %303 = vmatpush1.bf16.msra.mxu0 %v276
    %304 = vmatprep.subr.bf16.mxu0 %v275
    %305 = vmatpush1.bf16.msra.mxu0 %v274
    %306 = vmatprep.subr.bf16.mxu0 %v273
    %307 = vmatpush1.bf16.msra.mxu0 %v272
    %308 = vmatprep.subr.bf16.mxu0 %v271
    %309 = vmatpush1.bf16.msra.mxu0 %v270
    %310 = vmatprep.subr.bf16.mxu0 %v269
    %311 = vmatpush1.bf16.msra.mxu0 %v268
    %312 = vmatprep.subr.bf16.mxu0 %v267
    %313 = vmatpush1.bf16.msra.mxu0 %v266
    %314 = vmatprep.subr.bf16.mxu0 0
    %315 = vmatpush2.bf16.msra.mxu0 0
    %316 = vmatprep.subr.bf16.mxu0 0
    %317 = vmatpush2.bf16.msra.mxu0 0
    %318 = vmatprep.subr.bf16.mxu0 0
    %319 = vmatpush2.bf16.msra.mxu0 0
    %320 = vmatprep.subr.bf16.mxu0 0
    %321 = vmatpush2.bf16.msra.mxu0 0
    %322 = vmatprep.subr.bf16.mxu0 0
    %323 = vmatpush2.bf16.msra.mxu0 0
    %324 = vmatprep.subr.bf16.mxu0 0
    %325 = vmatpush2.bf16.msra.mxu0 0
    %326 = vmatprep.subr.bf16.mxu0 0
    %327 = vmatpush2.bf16.msra.mxu0 0
    %328 = vmatprep.subr.bf16.mxu0 0
    %329 = vmatpush2.bf16.msra.mxu0 0
    %330 = vmatprep.mubr.bf16.mxu0 0
    %331 = vmatmul.mubr.bf16.gmra.mxu0 %v189
    %v332 = vpop.f32.mrf.mxu0
    %v333 = vadd.f32 %v211, %v332
    %v334 = vpop.f32.mrf.mxu0
    %v335 = vadd.f32 %v215, %v334
    %v336 = vpop.f32.mrf.mxu0
    %v337 = vpop.f32.mrf.mxu0
    %338 = vdwg.mxu0
    %v339 = vmax.f32 %v333, 0.0
    %v340 = vmax.f32 %v335, 0.0
    %v341 = vpack.c.bf16 %v339, %v339
    %v342 = vpack.c.bf16 %v340, %v340
    %v343 = vld [vmem:[#allocation8] sm:$0xf]
    %v344 = vld [vmem:[#allocation8 + $0x4] sm:$0xf]
    %v345 = vld [vmem:[#allocation8 + $0x8] sm:$0xf]
    %v346 = vld [vmem:[#allocation8 + $0xc] sm:$0xf]
    %v347 = vld [vmem:[#allocation8 + $0x10] sm:$0xf]
    %v348 = vld [vmem:[#allocation8 + $0x14] sm:$0xf]
    %v349 = vld [vmem:[#allocation8 + $0x18] sm:$0xf]
    %v350 = vld [vmem:[#allocation8 + $0x1c] sm:$0xf]
    %v351 = vld [vmem:[#allocation8 + $0x20] sm:$0xf]
    %v352 = vld [vmem:[#allocation8 + $0x24] sm:$0xf]
    %v353 = vld [vmem:[#allocation8 + $0x28] sm:$0xf]
    %v354 = vld [vmem:[#allocation8 + $0x2c] sm:$0xf]
    %v355 = vld [vmem:[#allocation8 + $0x30] sm:$0xf]
    %v356 = vld [vmem:[#allocation8 + $0x34] sm:$0xf]
    %v357 = vld [vmem:[#allocation8 + $0x38] sm:$0xf]
    %v358 = vld [vmem:[#allocation8 + $0x3c] sm:$0xf]
    %v359 = vld [vmem:[#allocation8 + $0x40] sm:$0xf]
    %v360 = vld [vmem:[#allocation8 + $0x44] sm:$0xf]
    %v361 = vld [vmem:[#allocation8 + $0x48] sm:$0xf]
    %v362 = vld [vmem:[#allocation8 + $0x4c] sm:$0xf]
    %v363 = vld [vmem:[#allocation8 + $0x50] sm:$0xf]
    %v364 = vld [vmem:[#allocation8 + $0x54] sm:$0xf]
    %v365 = vld [vmem:[#allocation8 + $0x58] sm:$0xf]
    %v366 = vld [vmem:[#allocation8 + $0x5c] sm:$0xf]
    %v367 = vld [vmem:[#allocation8 + $0x60] sm:$0xf]
    %v368 = vld [vmem:[#allocation8 + $0x64] sm:$0xf]
    %v369 = vld [vmem:[#allocation8 + $0x68] sm:$0xf]
    %v370 = vld [vmem:[#allocation8 + $0x6c] sm:$0xf]
    %v371 = vld [vmem:[#allocation8 + $0x70] sm:$0xf]
    %v372 = vld [vmem:[#allocation8 + $0x74] sm:$0xf]
    %v373 = vld [vmem:[#allocation8 + $0x78] sm:$0xf]
    %v374 = vld [vmem:[#allocation8 + $0x7c] sm:$0xf]
    %v375 = vld [vmem:[%s6] sm:$0x1]
    %v377 = vlaneseq
    %v378 = vshrl.u32 %v377, 7
    %v379 = vsub.s32 0, %v378
    %v380 = vrot.slane %v375, %v379
    %v414 = vunpack.c.l.b16 %v343
    %v415 = vunpack.c.l.b16 %v344
    %v416 = vunpack.c.l.b16 %v345
    %v417 = vunpack.c.l.b16 %v346
    %v418 = vunpack.c.l.b16 %v347
    %v419 = vunpack.c.l.b16 %v348
    %v420 = vunpack.c.l.b16 %v349
    %v421 = vunpack.c.l.b16 %v350
    %v422 = vunpack.c.l.b16 %v351
    %v423 = vunpack.c.l.b16 %v352
    %v424 = vunpack.c.l.b16 %v353
    %v425 = vunpack.c.l.b16 %v354
    %v426 = vunpack.c.l.b16 %v355
    %v427 = vunpack.c.l.b16 %v356
    %v428 = vunpack.c.l.b16 %v357
    %v429 = vunpack.c.l.b16 %v358
    %v430 = vunpack.c.l.b16 %v359
    %v431 = vunpack.c.l.b16 %v360
    %v432 = vunpack.c.l.b16 %v361
    %v433 = vunpack.c.l.b16 %v362
    %v434 = vunpack.c.l.b16 %v363
    %v435 = vunpack.c.l.b16 %v364
    %v436 = vunpack.c.l.b16 %v365
    %v437 = vunpack.c.l.b16 %v366
    %v438 = vunpack.c.l.b16 %v367
    %v439 = vunpack.c.l.b16 %v368
    %v440 = vunpack.c.l.b16 %v369
    %v441 = vunpack.c.l.b16 %v370
    %v442 = vunpack.c.l.b16 %v371
    %v443 = vunpack.c.l.b16 %v372
    %v444 = vunpack.c.l.b16 %v373
    %v445 = vunpack.c.l.b16 %v374
    %v446 = vpack.c.b16 %v415, %v414
    %v447 = vpack.c.b16 %v417, %v416
    %v448 = vpack.c.b16 %v419, %v418
    %v449 = vpack.c.b16 %v421, %v420
    %v450 = vpack.c.b16 %v423, %v422
    %v451 = vpack.c.b16 %v425, %v424
    %v452 = vpack.c.b16 %v427, %v426
    %v453 = vpack.c.b16 %v429, %v428
    %v454 = vpack.c.b16 %v431, %v430
    %v455 = vpack.c.b16 %v433, %v432
    %v456 = vpack.c.b16 %v435, %v434
    %v457 = vpack.c.b16 %v437, %v436
    %v458 = vpack.c.b16 %v439, %v438
    %v459 = vpack.c.b16 %v441, %v440
    %v460 = vpack.c.b16 %v443, %v442
    %v461 = vpack.c.b16 %v445, %v444
    %478 = vmatprep.subr.bf16.mxu0 0
    %479 = vmatpush1.bf16.msra.mxu0 %v453
    %480 = vmatprep.subr.bf16.mxu0 0
    %481 = vmatpush1.bf16.msra.mxu0 %v452
    %482 = vmatprep.subr.bf16.mxu0 0
    %483 = vmatpush1.bf16.msra.mxu0 %v451
    %484 = vmatprep.subr.bf16.mxu0 0
    %485 = vmatpush1.bf16.msra.mxu0 %v450
    %486 = vmatprep.subr.bf16.mxu0 0
    %487 = vmatpush1.bf16.msra.mxu0 %v449
    %488 = vmatprep.subr.bf16.mxu0 0
    %489 = vmatpush1.bf16.msra.mxu0 %v448
    %490 = vmatprep.subr.bf16.mxu0 0
    %491 = vmatpush1.bf16.msra.mxu0 %v447
    %492 = vmatprep.subr.bf16.mxu0 0
    %493 = vmatpush1.bf16.msra.mxu0 %v446
    %494 = vmatprep.subr.bf16.mxu0 0
    %495 = vmatpush2.bf16.msra.mxu0 %v461
    %496 = vmatprep.subr.bf16.mxu0 0
    %497 = vmatpush2.bf16.msra.mxu0 %v460
    %498 = vmatprep.subr.bf16.mxu0 0
    %499 = vmatpush2.bf16.msra.mxu0 %v459
    %500 = vmatprep.subr.bf16.mxu0 0
    %501 = vmatpush2.bf16.msra.mxu0 %v458
    %502 = vmatprep.subr.bf16.mxu0 0
    %503 = vmatpush2.bf16.msra.mxu0 %v457
    %504 = vmatprep.subr.bf16.mxu0 0
    %505 = vmatpush2.bf16.msra.mxu0 %v456
    %506 = vmatprep.subr.bf16.mxu0 0
    %507 = vmatpush2.bf16.msra.mxu0 %v455
    %508 = vmatprep.subr.bf16.mxu0 0
    %509 = vmatpush2.bf16.msra.mxu0 %v454
    %510 = vmatprep.mubr.bf16.mxu0 %v342
    %511 = vmatmul.mubr.bf16.gmra.mxu0 %v341
    %v512 = vpop.f32.mrf.mxu0
    %v513 = vadd.f32 %v380, %v512
    %v514 = vpop.f32.mrf.mxu0
    %v515 = vpop.f32.mrf.mxu0
    %v516 = vpop.f32.mrf.mxu0
    %517 = vdwg.mxu0
    %v518 = vmax.f32 %v513, 0.0
    %v519 = vpack.c.bf16 %v518, %v518
    %v520 = vld [vmem:[#allocation10] sm:$0xf]
    %v521 = vld [vmem:[#allocation10 + $0x4] sm:$0xf]
    %v522 = vld [vmem:[#allocation10 + $0x8] sm:$0xf]
    %v523 = vld [vmem:[#allocation10 + $0xc] sm:$0xf]
    %v524 = vld [vmem:[#allocation10 + $0x10] sm:$0xf]
    %v525 = vld [vmem:[#allocation10 + $0x14] sm:$0xf]
    %v526 = vld [vmem:[#allocation10 + $0x18] sm:$0xf]
    %v527 = vld [vmem:[#allocation10 + $0x1c] sm:$0xf]
    %v528 = vld [vmem:[#allocation10 + $0x20] sm:$0xf]
    %v529 = vld [vmem:[#allocation10 + $0x24] sm:$0xf]
    %v530 = vld [vmem:[#allocation10 + $0x28] sm:$0xf]
    %v531 = vld [vmem:[#allocation10 + $0x2c] sm:$0xf]
    %v532 = vld [vmem:[#allocation10 + $0x30] sm:$0xf]
    %v533 = vld [vmem:[#allocation10 + $0x34] sm:$0xf]
    %v534 = vld [vmem:[#allocation10 + $0x38] sm:$0xf]
    %v535 = vld [vmem:[#allocation10 + $0x3c] sm:$0xf]
    %v536 = vld [vmem:[%s8] sm:$0x1]
    %v538 = vlaneseq
    %v539 = vshrl.u32 %v538, 7
    %v540 = vsub.s32 0, %v539
    %v541 = vrot.slane %v536, %v540
    %v559 = vunpack.c.l.b16 %v520
    %v560 = vunpack.c.l.b16 %v521
    %v561 = vunpack.c.l.b16 %v522
    %v562 = vunpack.c.l.b16 %v523
    %v563 = vunpack.c.l.b16 %v524
    %v564 = vunpack.c.l.b16 %v525
    %v565 = vunpack.c.l.b16 %v526
    %v566 = vunpack.c.l.b16 %v527
    %v567 = vunpack.c.l.b16 %v528
    %v568 = vunpack.c.l.b16 %v529
    %v569 = vunpack.c.l.b16 %v530
    %v570 = vunpack.c.l.b16 %v531
    %v571 = vunpack.c.l.b16 %v532
    %v572 = vunpack.c.l.b16 %v533
    %v573 = vunpack.c.l.b16 %v534
    %v574 = vunpack.c.l.b16 %v535
    %v575 = vpack.c.b16 %v560, %v559
    %v576 = vpack.c.b16 %v562, %v561
    %v577 = vpack.c.b16 %v564, %v563
    %v578 = vpack.c.b16 %v566, %v565
    %v579 = vpack.c.b16 %v568, %v567
    %v580 = vpack.c.b16 %v570, %v569
    %v581 = vpack.c.b16 %v572, %v571
    %v582 = vpack.c.b16 %v574, %v573
    %591 = vmatprep.subr.bf16.mxu0 0
    %592 = vmatpush1.bf16.msra.mxu0 %v582
    %593 = vmatprep.subr.bf16.mxu0 0
    %594 = vmatpush1.bf16.msra.mxu0 %v581
    %595 = vmatprep.subr.bf16.mxu0 0
    %596 = vmatpush1.bf16.msra.mxu0 %v580
    %597 = vmatprep.subr.bf16.mxu0 0
    %598 = vmatpush1.bf16.msra.mxu0 %v579
    %599 = vmatprep.subr.bf16.mxu0 0
    %600 = vmatpush1.bf16.msra.mxu0 %v578
    %601 = vmatprep.subr.bf16.mxu0 0
    %602 = vmatpush1.bf16.msra.mxu0 %v577
    %603 = vmatprep.subr.bf16.mxu0 0
    %604 = vmatpush1.bf16.msra.mxu0 %v576
    %605 = vmatprep.subr.bf16.mxu0 0
    %606 = vmatpush1.bf16.msra.mxu0 %v575
    %607 = vmatprep.subr.bf16.mxu0 0
    %608 = vmatpush2.bf16.msra.mxu0 0
    %609 = vmatprep.subr.bf16.mxu0 0
    %610 = vmatpush2.bf16.msra.mxu0 0
    %611 = vmatprep.subr.bf16.mxu0 0
    %612 = vmatpush2.bf16.msra.mxu0 0
    %613 = vmatprep.subr.bf16.mxu0 0
    %614 = vmatpush2.bf16.msra.mxu0 0
    %615 = vmatprep.subr.bf16.mxu0 0
    %616 = vmatpush2.bf16.msra.mxu0 0
    %617 = vmatprep.subr.bf16.mxu0 0
    %618 = vmatpush2.bf16.msra.mxu0 0
    %619 = vmatprep.subr.bf16.mxu0 0
    %620 = vmatpush2.bf16.msra.mxu0 0
    %621 = vmatprep.subr.bf16.mxu0 0
    %622 = vmatpush2.bf16.msra.mxu0 0
    %623 = vmatprep.mubr.bf16.mxu0 0
    %624 = vmatmul.mubr.bf16.gmra.mxu0 %v519
    %v625 = vpop.f32.mrf.mxu0
    %v626 = vadd.f32 %v541, %v625
    %v627 = vpop.f32.mrf.mxu0
    %v628 = vpop.f32.mrf.mxu0
    %v629 = vpop.f32.mrf.mxu0
    %630 = vdwg.mxu0
    %v631 = vmax.f32 %v626, 0.0
    %v632 = vpack.c.bf16 %v631, %v631
    %v633 = vld [vmem:[#allocation11] sm:$0xf]
    %v634 = vld [vmem:[#allocation11 + $0x4] sm:$0xf]
    %v635 = vld [vmem:[#allocation11 + $0x8] sm:$0xf]
    %v636 = vld [vmem:[#allocation11 + $0xc] sm:$0xf]
    %v637 = vld [vmem:[#allocation11 + $0x10] sm:$0xf]
    %v638 = vld [vmem:[#allocation11 + $0x14] sm:$0xf]
    %v639 = vld [vmem:[#allocation11 + $0x18] sm:$0xf]
    %v640 = vld [vmem:[#allocation11 + $0x1c] sm:$0xf]
    %v641 = vld [vmem:[#allocation11 + $0x20] sm:$0xf]
    %v642 = vld [vmem:[#allocation11 + $0x24] sm:$0xf]
    %v643 = vld [vmem:[#allocation11 + $0x28] sm:$0xf]
    %v644 = vld [vmem:[#allocation11 + $0x2c] sm:$0xf]
    %v645 = vld [vmem:[#allocation11 + $0x30] sm:$0xf]
    %v646 = vld [vmem:[#allocation11 + $0x34] sm:$0xf]
    %v647 = vld [vmem:[#allocation11 + $0x38] sm:$0xf]
    %v648 = vld [vmem:[#allocation11 + $0x3c] sm:$0xf]
    %v649 = vld [vmem:[%s10] sm:$0x1]
    %v651 = vlaneseq
    %v652 = vshrl.u32 %v651, 7
    %v653 = vsub.s32 0, %v652
    %v654 = vrot.slane %v649, %v653
    %v672 = vunpack.c.l.b16 %v633
    %v673 = vunpack.c.l.b16 %v634
    %v674 = vunpack.c.l.b16 %v635
    %v675 = vunpack.c.l.b16 %v636
    %v676 = vunpack.c.l.b16 %v637
    %v677 = vunpack.c.l.b16 %v638
    %v678 = vunpack.c.l.b16 %v639
    %v679 = vunpack.c.l.b16 %v640
    %v680 = vunpack.c.l.b16 %v641
    %v681 = vunpack.c.l.b16 %v642
    %v682 = vunpack.c.l.b16 %v643
    %v683 = vunpack.c.l.b16 %v644
    %v684 = vunpack.c.l.b16 %v645
    %v685 = vunpack.c.l.b16 %v646
    %v686 = vunpack.c.l.b16 %v647
    %v687 = vunpack.c.l.b16 %v648
    %v688 = vpack.c.b16 %v673, %v672
    %v689 = vpack.c.b16 %v675, %v674
    %v690 = vpack.c.b16 %v677, %v676
    %v691 = vpack.c.b16 %v679, %v678
    %v692 = vpack.c.b16 %v681, %v680
    %v693 = vpack.c.b16 %v683, %v682
    %v694 = vpack.c.b16 %v685, %v684
    %v695 = vpack.c.b16 %v687, %v686
    %704 = vmatprep.subr.bf16.mxu0 0
    %705 = vmatpush1.bf16.msra.mxu0 %v695
    %706 = vmatprep.subr.bf16.mxu0 0
    %707 = vmatpush1.bf16.msra.mxu0 %v694
    %708 = vmatprep.subr.bf16.mxu0 0
    %709 = vmatpush1.bf16.msra.mxu0 %v693
    %710 = vmatprep.subr.bf16.mxu0 0
    %711 = vmatpush1.bf16.msra.mxu0 %v692
    %712 = vmatprep.subr.bf16.mxu0 0
    %713 = vmatpush1.bf16.msra.mxu0 %v691
    %714 = vmatprep.subr.bf16.mxu0 0
    %715 = vmatpush1.bf16.msra.mxu0 %v690
    %716 = vmatprep.subr.bf16.mxu0 0
    %717 = vmatpush1.bf16.msra.mxu0 %v689
    %718 = vmatprep.subr.bf16.mxu0 0
    %719 = vmatpush1.bf16.msra.mxu0 %v688
    %720 = vmatprep.subr.bf16.mxu0 0
    %721 = vmatpush2.bf16.msra.mxu0 0
    %722 = vmatprep.subr.bf16.mxu0 0
    %723 = vmatpush2.bf16.msra.mxu0 0
    %724 = vmatprep.subr.bf16.mxu0 0
    %725 = vmatpush2.bf16.msra.mxu0 0
    %726 = vmatprep.subr.bf16.mxu0 0
    %727 = vmatpush2.bf16.msra.mxu0 0
    %728 = vmatprep.subr.bf16.mxu0 0
    %729 = vmatpush2.bf16.msra.mxu0 0
    %730 = vmatprep.subr.bf16.mxu0 0
    %731 = vmatpush2.bf16.msra.mxu0 0
    %732 = vmatprep.subr.bf16.mxu0 0
    %733 = vmatpush2.bf16.msra.mxu0 0
    %734 = vmatprep.subr.bf16.mxu0 0
    %735 = vmatpush2.bf16.msra.mxu0 0
    %736 = vmatprep.mubr.bf16.mxu0 0
    %737 = vmatmul.mubr.bf16.gmra.mxu0 %v632
    %v738 = vpop.f32.mrf.mxu0
    %v739 = vadd.f32 %v654, %v738
    %v740 = vpop.f32.mrf.mxu0
    %v741 = vpop.f32.mrf.mxu0
    %v742 = vpop.f32.mrf.mxu0
    %743 = vdwg.mxu0
    %744 = vst [vmem:[#allocation13] sm:$0xff] %v739
    // Predicated region
    $region70: #{tpu_custom_call.1} parent=1 // pred_check
      _
    $region71: #{tpu_custom_call.1} parent=1 // pred_check_branch
      %746 = sbr.rel (0) target = $region73
    $region72: #{tpu_custom_call.1} parent=1 // pred_region
      %s748 = ssub.s32 128, 128
      %749 = vsyncadd [#allocation4], %s748
      %s751 = sshll.u32 [#allocation13], 4
      %s752 = int_to_ptr.vmem [resolvable:$true] %s751
      %754 = dma.vmem_to_hbm [thread:$0]  %s752, 128, %s11, [#allocation4]
    $region73: #{tpu_custom_call.1} parent=1 // pred_fallthru
      _
    // Predicated region
    $region74: #{tpu_custom_call.1} parent=1 // pred_check
      _
    $region75: #{tpu_custom_call.1} parent=1 // pred_check_branch
      %756 = sbr.rel (0) target = $region77
    $region76: #{tpu_custom_call.1} parent=1 // pred_region
      %757 = dma.done [#allocation4], 128
    $region77: #{tpu_custom_call.1} parent=1 // pred_fallthru
      _
    %758 = vsyncpa [#allocation3], 1
    %759 = vsyncpa [#allocation6], 1
    %760 = vsyncpa [#allocation9], 1
    %761 = vsyncpa [#allocation12], 1
    %762 = vsyncpa [#allocation4], 1

</llo_original>
